<compile_context>
chip_gen: v7x
topology: tpu7x:2x2x1
jax: 0.10.0
libtpu: 0.0.40
codegen_flags: <defaults>
</compile_context>

<pallas_src>
import functools

import jax
import jax.numpy as jnp
from jax import lax
from jax.experimental import pallas as pl
from jax.experimental.pallas import tpu as pltpu

_LANE = 128                # vreg lane width
_SUBLANE = 8               # vreg sublane count (f32)
_DEFAULT_TILE_ROWS = 512   # 512x128 f32 = 256 KiB per buffer (review: 256-512)
_MAX_STATIC_UNROLL = 64    # above this, use fori_loop(unroll=8)


def _round_up(v, m):
    return ((v + m - 1) // m) * m


def _device_kind():
    try:
        return jax.devices()[0].device_kind.lower()
    except Exception:
        return ""


def _eup_supports_bf16():
    """bf16 VPU/EUP exists on v6e and v7x; v5e (and unknown) -> f32."""
    kind = _device_kind()
    return ("v6" in kind) or ("v7" in kind)


def _dim_semantics(grid_size):
    """Prefer CORE_PARALLEL on v7x (2 TCs per chip); otherwise "parallel"."""
    kind = _device_kind()
    if "v7" in kind and grid_size % 2 == 0:
        cp = getattr(pltpu, "CORE_PARALLEL", None)
        if cp is not None:
            return (cp,)
    return ("parallel",)


def sinnet_kernel(x_ref, w1_ref, b1_ref, w2_ref, b2_ref, o_ref, *, compute_dtype):
    """One batch tile.

    x_ref : (TILE_ROWS, 128) f32 in VMEM  -- batch laid out lane-dense.
    w1_ref, b1_ref, w2_ref : (H,) f32 in SMEM;  b2_ref : (1,) f32 in SMEM.
    o_ref : (TILE_ROWS, 128) f32 in VMEM.

    Per hidden unit: one VPU mul+add (possibly bf16), one EUP tanh, one VPU
    mul, one VPU add into an f32 accumulator.  No MXU, no XLU.
    """
    hidden = w1_ref.shape[0]
    x = x_ref[...].astype(compute_dtype)             # (TR, 128)

    def term(w1j, b1j, w2j):
        pre = x * w1j.astype(compute_dtype) + b1j.astype(compute_dtype)
        # tanh on EUP (bf16 on v6e/v7x); accumulate in f32 for accuracy.
        return jnp.tanh(pre).astype(jnp.float32) * w2j

    # Seed the accumulator with the first hidden term and b2 (no zeros pass,
    # no separate final +b2 pass).
    acc = term(w1_ref[0], b1_ref[0], w2_ref[0]) + b2_ref[0]

    if hidden <= _MAX_STATIC_UNROLL:
        # Small H: full static unroll keeps the EUP pipeline fed.
        for j in range(1, hidden):
            acc = acc + term(w1_ref[j], b1_ref[j], w2_ref[j])
    else:
        # Large H: bounded unroll, dynamic SMEM scalar indexing.
        def body(j, a):
            return a + term(w1_ref[j], b1_ref[j], w2_ref[j])
        acc = lax.fori_loop(1, hidden, body, acc, unroll=8)

    o_ref[...] = acc.astype(o_ref.dtype)


def sinnet_forward(x, w1, b1, w2, b2, *, tile_rows=None, compute_dtype=None):
    """Forward pass of SinNet: y = tanh(x @ w1 + b1) @ w2 + b2.

    x: (N, 1) f32; w1: (1, H); b1: (1, H); w2: (H, 1); b2: (1, 1).
    Returns (N, 1) in x.dtype.  compute_dtype=None -> auto (bf16 tanh on
    v6e/v7x, f32 elsewhere); accumulation is always f32.
    """
    n = x.shape[0]
    dtype = x.dtype

    if compute_dtype is None:
        compute_dtype = jnp.bfloat16 if _eup_supports_bf16() else jnp.float32

    # ---- lane-dense layout: batch -> (rows, 128) slab ----
    rows = max(1, -(-n // _LANE))
    if tile_rows is None:
        tile_rows = min(_DEFAULT_TILE_ROWS, _round_up(rows, _SUBLANE))
    tile_rows = _round_up(tile_rows, _SUBLANE)
    rows_pad = _round_up(rows, tile_rows)
    n_pad = rows_pad * _LANE

    x_flat = x.reshape(-1)
    if n_pad == n:
        # Tile-aligned batch: free reshape, no extra HBM padding pass.
        x_dense = x_flat.reshape(rows_pad, _LANE)
    else:
        x_dense = (jnp.zeros((n_pad,), dtype).at[:n].set(x_flat)
                   .reshape(rows_pad, _LANE))

    # ---- tiny parameters -> SMEM scalars (f32) ----
    w1_s = w1.reshape(-1).astype(jnp.float32)   # (H,)
    b1_s = b1.reshape(-1).astype(jnp.float32)   # (H,)
    w2_s = w2.reshape(-1).astype(jnp.float32)   # (H,)
    b2_s = b2.reshape(-1).astype(jnp.float32)   # (1,)

    grid_size = rows_pad // tile_rows
    smem_spec = pl.BlockSpec(memory_space=pltpu.MemorySpace.SMEM)
    kernel = functools.partial(sinnet_kernel, compute_dtype=compute_dtype)

    def run(semantics):
        return pl.pallas_call(
            kernel,
            out_shape=jax.ShapeDtypeStruct((rows_pad, _LANE), dtype),
            grid=(grid_size,),
            in_specs=[
                pl.BlockSpec((tile_rows, _LANE), lambda i: (i, 0)),  # x tile
                smem_spec,  # w1
                smem_spec,  # b1
                smem_spec,  # w2
                smem_spec,  # b2
            ],
            out_specs=pl.BlockSpec((tile_rows, _LANE), lambda i: (i, 0)),
            compiler_params=pltpu.CompilerParams(
                dimension_semantics=semantics,
            ),
        )(x_dense, w1_s, b1_s, w2_s, b2_s)

    semantics = _dim_semantics(grid_size)
    try:
        out = run(semantics)
    except Exception:
        if semantics == ("parallel",):
            raise
        out = run(("parallel",))  # safe fallback if CORE_PARALLEL is rejected

    # Undo the lane-dense layout (and drop padding only if any was added).
    if n_pad == n:
        return out.reshape(n, 1)
    return out.reshape(n_pad, 1)[:n]


def init_params(key, n_hidden):
    """Deterministic init mimicking torch.nn.Linear (uniform +-1/sqrt(fan_in))."""
    k1, k2, k3, k4 = jax.random.split(key, 4)
    bound1 = 1.0  # fan_in = 1 for fc1
    w1 = jax.random.uniform(k1, (1, n_hidden), jnp.float32, -bound1, bound1)
    b1 = jax.random.uniform(k2, (1, n_hidden), jnp.float32, -bound1, bound1)
    bound2 = 1.0 / jnp.sqrt(n_hidden)  # fan_in = n_hidden for fc2
    w2 = jax.random.uniform(k3, (n_hidden, 1), jnp.float32, -bound2, bound2)
    b2 = jax.random.uniform(k4, (1, 1), jnp.float32, -bound2, bound2)
    return w1, b1, w2, b2


if __name__ == "__main__":
    key = jax.random.PRNGKey(0)
    kx, kx2, kp = jax.random.split(key, 3)

    n_hidden = 32
    w1, b1, w2, b2 = init_params(kp, n_hidden)

    # --- small batch (ragged vs. 128 lanes -> exercises the padded path) ---
    batch = 8
    x = jax.random.uniform(kx, (batch, 1), jnp.float32, -jnp.pi, jnp.pi)
    ref = jnp.tanh(x @ w1 + b1) @ w2 + b2

    # Strict f32 check (runs the pure-f32 path on every chip generation).
    out_f32 = jax.block_until_ready(
        sinnet_forward(x, w1, b1, w2, b2, compute_dtype=jnp.float32))
    assert out_f32.shape == (batch, 1)
    assert jnp.allclose(out_f32, ref, atol=1e-5, rtol=1e-5)

    # Auto path (bf16 tanh on v6e/v7x, f32 elsewhere) -> looser tolerance.
    out_auto = jax.block_until_ready(sinnet_forward(x, w1, b1, w2, b2))
    auto_tol = 1e-1 if _eup_supports_bf16() else 1e-5
    assert jnp.allclose(out_auto, ref, atol=auto_tol, rtol=auto_tol)

    # --- tile-aligned batch (no-pad fast path, multiple grid steps) ---
    batch2 = 2048                      # = 16 rows of 128 lanes
    x2 = jax.random.uniform(kx2, (batch2, 1), jnp.float32, -jnp.pi, jnp.pi)
    ref2 = jnp.tanh(x2 @ w1 + b1) @ w2 + b2

    out2_f32 = jax.block_until_ready(
        sinnet_forward(x2, w1, b1, w2, b2, tile_rows=8,
                       compute_dtype=jnp.float32))
    assert out2_f32.shape == (batch2, 1)
    assert jnp.allclose(out2_f32, ref2, atol=1e-5, rtol=1e-5)

    out2_auto = jax.block_until_ready(
        sinnet_forward(x2, w1, b1, w2, b2, tile_rows=8))
    assert jnp.allclose(out2_auto, ref2, atol=auto_tol, rtol=auto_tol)

    print("KERNEL_OK")
</pallas_src>

<mosaic_0001>
module attributes {stable_mosaic.version = 11 : i64} {
  func.func @sinnet_kernel(%arg0: i32, %arg1: memref<8x128xf32, #tpu.memory_space<vmem>>, %arg2: memref<32xf32, #tpu.memory_space<smem>>, %arg3: memref<32xf32, #tpu.memory_space<smem>>, %arg4: memref<32xf32, #tpu.memory_space<smem>>, %arg5: memref<1xf32, #tpu.memory_space<smem>>, %arg6: memref<8x128xf32, #tpu.memory_space<vmem>>) attributes {dimension_semantics = [#tpu.dimension_semantics<parallel>], iteration_bounds = array<i64: 1>, scalar_prefetch = 0 : i64, scratch_operands = 0 : i64, tpu.core_type = #tpu.core_type<tc>, window_params = [{transform_indices = @transform_0, window_bounds = array<i64: 8, 128>}, {transform_indices = @transform_1, window_bounds = array<i64: 32>}, {transform_indices = @transform_2, window_bounds = array<i64: 32>}, {transform_indices = @transform_3, window_bounds = array<i64: 32>}, {transform_indices = @transform_4, window_bounds = array<i64: 1>}, {transform_indices = @transform_5, window_bounds = array<i64: 8, 128>}]} {
    %c0 = arith.constant 0 : index
    %c0_0 = arith.constant 0 : index
    %0 = vector.load %arg1[%c0, %c0_0] : memref<8x128xf32, #tpu.memory_space<vmem>>, vector<8x128xf32>
    %c0_1 = arith.constant 0 : index
    %1 = memref.load %arg2[%c0_1] : memref<32xf32, #tpu.memory_space<smem>>
    %c0_2 = arith.constant 0 : index
    %2 = memref.load %arg3[%c0_2] : memref<32xf32, #tpu.memory_space<smem>>
    %c0_3 = arith.constant 0 : index
    %3 = memref.load %arg4[%c0_3] : memref<32xf32, #tpu.memory_space<smem>>
    %4 = vector.broadcast %1 : f32 to vector<8x128xf32>
    %5 = arith.mulf %0, %4 : vector<8x128xf32>
    %6 = vector.broadcast %2 : f32 to vector<8x128xf32>
    %7 = arith.addf %5, %6 : vector<8x128xf32>
    %8 = math.tanh %7 : vector<8x128xf32>
    %9 = vector.broadcast %3 : f32 to vector<8x128xf32>
    %10 = arith.mulf %8, %9 : vector<8x128xf32>
    %c0_4 = arith.constant 0 : index
    %11 = memref.load %arg5[%c0_4] : memref<1xf32, #tpu.memory_space<smem>>
    %12 = vector.broadcast %11 : f32 to vector<8x128xf32>
    %13 = arith.addf %10, %12 : vector<8x128xf32>
    %c1 = arith.constant 1 : index
    %14 = memref.load %arg2[%c1] : memref<32xf32, #tpu.memory_space<smem>>
    %c1_5 = arith.constant 1 : index
    %15 = memref.load %arg3[%c1_5] : memref<32xf32, #tpu.memory_space<smem>>
    %c1_6 = arith.constant 1 : index
    %16 = memref.load %arg4[%c1_6] : memref<32xf32, #tpu.memory_space<smem>>
    %17 = vector.broadcast %14 : f32 to vector<8x128xf32>
    %18 = arith.mulf %0, %17 : vector<8x128xf32>
    %19 = vector.broadcast %15 : f32 to vector<8x128xf32>
    %20 = arith.addf %18, %19 : vector<8x128xf32>
    %21 = math.tanh %20 : vector<8x128xf32>
    %22 = vector.broadcast %16 : f32 to vector<8x128xf32>
    %23 = arith.mulf %21, %22 : vector<8x128xf32>
    %24 = arith.addf %13, %23 : vector<8x128xf32>
    %c2 = arith.constant 2 : index
    %25 = memref.load %arg2[%c2] : memref<32xf32, #tpu.memory_space<smem>>
    %c2_7 = arith.constant 2 : index
    %26 = memref.load %arg3[%c2_7] : memref<32xf32, #tpu.memory_space<smem>>
    %c2_8 = arith.constant 2 : index
    %27 = memref.load %arg4[%c2_8] : memref<32xf32, #tpu.memory_space<smem>>
    %28 = vector.broadcast %25 : f32 to vector<8x128xf32>
    %29 = arith.mulf %0, %28 : vector<8x128xf32>
    %30 = vector.broadcast %26 : f32 to vector<8x128xf32>
    %31 = arith.addf %29, %30 : vector<8x128xf32>
    %32 = math.tanh %31 : vector<8x128xf32>
    %33 = vector.broadcast %27 : f32 to vector<8x128xf32>
    %34 = arith.mulf %32, %33 : vector<8x128xf32>
    %35 = arith.addf %24, %34 : vector<8x128xf32>
    %c3 = arith.constant 3 : index
    %36 = memref.load %arg2[%c3] : memref<32xf32, #tpu.memory_space<smem>>
    %c3_9 = arith.constant 3 : index
    %37 = memref.load %arg3[%c3_9] : memref<32xf32, #tpu.memory_space<smem>>
    %c3_10 = arith.constant 3 : index
    %38 = memref.load %arg4[%c3_10] : memref<32xf32, #tpu.memory_space<smem>>
    %39 = vector.broadcast %36 : f32 to vector<8x128xf32>
    %40 = arith.mulf %0, %39 : vector<8x128xf32>
    %41 = vector.broadcast %37 : f32 to vector<8x128xf32>
    %42 = arith.addf %40, %41 : vector<8x128xf32>
    %43 = math.tanh %42 : vector<8x128xf32>
    %44 = vector.broadcast %38 : f32 to vector<8x128xf32>
    %45 = arith.mulf %43, %44 : vector<8x128xf32>
    %46 = arith.addf %35, %45 : vector<8x128xf32>
    %c4 = arith.constant 4 : index
    %47 = memref.load %arg2[%c4] : memref<32xf32, #tpu.memory_space<smem>>
    %c4_11 = arith.constant 4 : index
    %48 = memref.load %arg3[%c4_11] : memref<32xf32, #tpu.memory_space<smem>>
    %c4_12 = arith.constant 4 : index
    %49 = memref.load %arg4[%c4_12] : memref<32xf32, #tpu.memory_space<smem>>
    %50 = vector.broadcast %47 : f32 to vector<8x128xf32>
    %51 = arith.mulf %0, %50 : vector<8x128xf32>
    %52 = vector.broadcast %48 : f32 to vector<8x128xf32>
    %53 = arith.addf %51, %52 : vector<8x128xf32>
    %54 = math.tanh %53 : vector<8x128xf32>
    %55 = vector.broadcast %49 : f32 to vector<8x128xf32>
    %56 = arith.mulf %54, %55 : vector<8x128xf32>
    %57 = arith.addf %46, %56 : vector<8x128xf32>
    %c5 = arith.constant 5 : index
    %58 = memref.load %arg2[%c5] : memref<32xf32, #tpu.memory_space<smem>>
    %c5_13 = arith.constant 5 : index
    %59 = memref.load %arg3[%c5_13] : memref<32xf32, #tpu.memory_space<smem>>
    %c5_14 = arith.constant 5 : index
    %60 = memref.load %arg4[%c5_14] : memref<32xf32, #tpu.memory_space<smem>>
    %61 = vector.broadcast %58 : f32 to vector<8x128xf32>
    %62 = arith.mulf %0, %61 : vector<8x128xf32>
    %63 = vector.broadcast %59 : f32 to vector<8x128xf32>
    %64 = arith.addf %62, %63 : vector<8x128xf32>
    %65 = math.tanh %64 : vector<8x128xf32>
    %66 = vector.broadcast %60 : f32 to vector<8x128xf32>
    %67 = arith.mulf %65, %66 : vector<8x128xf32>
    %68 = arith.addf %57, %67 : vector<8x128xf32>
    %c6 = arith.constant 6 : index
    %69 = memref.load %arg2[%c6] : memref<32xf32, #tpu.memory_space<smem>>
    %c6_15 = arith.constant 6 : index
    %70 = memref.load %arg3[%c6_15] : memref<32xf32, #tpu.memory_space<smem>>
    %c6_16 = arith.constant 6 : index
    %71 = memref.load %arg4[%c6_16] : memref<32xf32, #tpu.memory_space<smem>>
    %72 = vector.broadcast %69 : f32 to vector<8x128xf32>
    %73 = arith.mulf %0, %72 : vector<8x128xf32>
    %74 = vector.broadcast %70 : f32 to vector<8x128xf32>
    %75 = arith.addf %73, %74 : vector<8x128xf32>
    %76 = math.tanh %75 : vector<8x128xf32>
    %77 = vector.broadcast %71 : f32 to vector<8x128xf32>
    %78 = arith.mulf %76, %77 : vector<8x128xf32>
    %79 = arith.addf %68, %78 : vector<8x128xf32>
    %c7 = arith.constant 7 : index
    %80 = memref.load %arg2[%c7] : memref<32xf32, #tpu.memory_space<smem>>
    %c7_17 = arith.constant 7 : index
    %81 = memref.load %arg3[%c7_17] : memref<32xf32, #tpu.memory_space<smem>>
    %c7_18 = arith.constant 7 : index
    %82 = memref.load %arg4[%c7_18] : memref<32xf32, #tpu.memory_space<smem>>
    %83 = vector.broadcast %80 : f32 to vector<8x128xf32>
    %84 = arith.mulf %0, %83 : vector<8x128xf32>
    %85 = vector.broadcast %81 : f32 to vector<8x128xf32>
    %86 = arith.addf %84, %85 : vector<8x128xf32>
    %87 = math.tanh %86 : vector<8x128xf32>
    %88 = vector.broadcast %82 : f32 to vector<8x128xf32>
    %89 = arith.mulf %87, %88 : vector<8x128xf32>
    %90 = arith.addf %79, %89 : vector<8x128xf32>
    %c8 = arith.constant 8 : index
    %91 = memref.load %arg2[%c8] : memref<32xf32, #tpu.memory_space<smem>>
    %c8_19 = arith.constant 8 : index
    %92 = memref.load %arg3[%c8_19] : memref<32xf32, #tpu.memory_space<smem>>
    %c8_20 = arith.constant 8 : index
    %93 = memref.load %arg4[%c8_20] : memref<32xf32, #tpu.memory_space<smem>>
    %94 = vector.broadcast %91 : f32 to vector<8x128xf32>
    %95 = arith.mulf %0, %94 : vector<8x128xf32>
    %96 = vector.broadcast %92 : f32 to vector<8x128xf32>
    %97 = arith.addf %95, %96 : vector<8x128xf32>
    %98 = math.tanh %97 : vector<8x128xf32>
    %99 = vector.broadcast %93 : f32 to vector<8x128xf32>
    %100 = arith.mulf %98, %99 : vector<8x128xf32>
    %101 = arith.addf %90, %100 : vector<8x128xf32>
    %c9 = arith.constant 9 : index
    %102 = memref.load %arg2[%c9] : memref<32xf32, #tpu.memory_space<smem>>
    %c9_21 = arith.constant 9 : index
    %103 = memref.load %arg3[%c9_21] : memref<32xf32, #tpu.memory_space<smem>>
    %c9_22 = arith.constant 9 : index
    %104 = memref.load %arg4[%c9_22] : memref<32xf32, #tpu.memory_space<smem>>
    %105 = vector.broadcast %102 : f32 to vector<8x128xf32>
    %106 = arith.mulf %0, %105 : vector<8x128xf32>
    %107 = vector.broadcast %103 : f32 to vector<8x128xf32>
    %108 = arith.addf %106, %107 : vector<8x128xf32>
    %109 = math.tanh %108 : vector<8x128xf32>
    %110 = vector.broadcast %104 : f32 to vector<8x128xf32>
    %111 = arith.mulf %109, %110 : vector<8x128xf32>
    %112 = arith.addf %101, %111 : vector<8x128xf32>
    %c10 = arith.constant 10 : index
    %113 = memref.load %arg2[%c10] : memref<32xf32, #tpu.memory_space<smem>>
    %c10_23 = arith.constant 10 : index
    %114 = memref.load %arg3[%c10_23] : memref<32xf32, #tpu.memory_space<smem>>
    %c10_24 = arith.constant 10 : index
    %115 = memref.load %arg4[%c10_24] : memref<32xf32, #tpu.memory_space<smem>>
    %116 = vector.broadcast %113 : f32 to vector<8x128xf32>
    %117 = arith.mulf %0, %116 : vector<8x128xf32>
    %118 = vector.broadcast %114 : f32 to vector<8x128xf32>
    %119 = arith.addf %117, %118 : vector<8x128xf32>
    %120 = math.tanh %119 : vector<8x128xf32>
    %121 = vector.broadcast %115 : f32 to vector<8x128xf32>
    %122 = arith.mulf %120, %121 : vector<8x128xf32>
    %123 = arith.addf %112, %122 : vector<8x128xf32>
    %c11 = arith.constant 11 : index
    %124 = memref.load %arg2[%c11] : memref<32xf32, #tpu.memory_space<smem>>
    %c11_25 = arith.constant 11 : index
    %125 = memref.load %arg3[%c11_25] : memref<32xf32, #tpu.memory_space<smem>>
    %c11_26 = arith.constant 11 : index
    %126 = memref.load %arg4[%c11_26] : memref<32xf32, #tpu.memory_space<smem>>
    %127 = vector.broadcast %124 : f32 to vector<8x128xf32>
    %128 = arith.mulf %0, %127 : vector<8x128xf32>
    %129 = vector.broadcast %125 : f32 to vector<8x128xf32>
    %130 = arith.addf %128, %129 : vector<8x128xf32>
    %131 = math.tanh %130 : vector<8x128xf32>
    %132 = vector.broadcast %126 : f32 to vector<8x128xf32>
    %133 = arith.mulf %131, %132 : vector<8x128xf32>
    %134 = arith.addf %123, %133 : vector<8x128xf32>
    %c12 = arith.constant 12 : index
    %135 = memref.load %arg2[%c12] : memref<32xf32, #tpu.memory_space<smem>>
    %c12_27 = arith.constant 12 : index
    %136 = memref.load %arg3[%c12_27] : memref<32xf32, #tpu.memory_space<smem>>
    %c12_28 = arith.constant 12 : index
    %137 = memref.load %arg4[%c12_28] : memref<32xf32, #tpu.memory_space<smem>>
    %138 = vector.broadcast %135 : f32 to vector<8x128xf32>
    %139 = arith.mulf %0, %138 : vector<8x128xf32>
    %140 = vector.broadcast %136 : f32 to vector<8x128xf32>
    %141 = arith.addf %139, %140 : vector<8x128xf32>
    %142 = math.tanh %141 : vector<8x128xf32>
    %143 = vector.broadcast %137 : f32 to vector<8x128xf32>
    %144 = arith.mulf %142, %143 : vector<8x128xf32>
    %145 = arith.addf %134, %144 : vector<8x128xf32>
    %c13 = arith.constant 13 : index
    %146 = memref.load %arg2[%c13] : memref<32xf32, #tpu.memory_space<smem>>
    %c13_29 = arith.constant 13 : index
    %147 = memref.load %arg3[%c13_29] : memref<32xf32, #tpu.memory_space<smem>>
    %c13_30 = arith.constant 13 : index
    %148 = memref.load %arg4[%c13_30] : memref<32xf32, #tpu.memory_space<smem>>
    %149 = vector.broadcast %146 : f32 to vector<8x128xf32>
    %150 = arith.mulf %0, %149 : vector<8x128xf32>
    %151 = vector.broadcast %147 : f32 to vector<8x128xf32>
    %152 = arith.addf %150, %151 : vector<8x128xf32>
    %153 = math.tanh %152 : vector<8x128xf32>
    %154 = vector.broadcast %148 : f32 to vector<8x128xf32>
    %155 = arith.mulf %153, %154 : vector<8x128xf32>
    %156 = arith.addf %145, %155 : vector<8x128xf32>
    %c14 = arith.constant 14 : index
    %157 = memref.load %arg2[%c14] : memref<32xf32, #tpu.memory_space<smem>>
    %c14_31 = arith.constant 14 : index
    %158 = memref.load %arg3[%c14_31] : memref<32xf32, #tpu.memory_space<smem>>
    %c14_32 = arith.constant 14 : index
    %159 = memref.load %arg4[%c14_32] : memref<32xf32, #tpu.memory_space<smem>>
    %160 = vector.broadcast %157 : f32 to vector<8x128xf32>
    %161 = arith.mulf %0, %160 : vector<8x128xf32>
    %162 = vector.broadcast %158 : f32 to vector<8x128xf32>
    %163 = arith.addf %161, %162 : vector<8x128xf32>
    %164 = math.tanh %163 : vector<8x128xf32>
    %165 = vector.broadcast %159 : f32 to vector<8x128xf32>
    %166 = arith.mulf %164, %165 : vector<8x128xf32>
    %167 = arith.addf %156, %166 : vector<8x128xf32>
    %c15 = arith.constant 15 : index
    %168 = memref.load %arg2[%c15] : memref<32xf32, #tpu.memory_space<smem>>
    %c15_33 = arith.constant 15 : index
    %169 = memref.load %arg3[%c15_33] : memref<32xf32, #tpu.memory_space<smem>>
    %c15_34 = arith.constant 15 : index
    %170 = memref.load %arg4[%c15_34] : memref<32xf32, #tpu.memory_space<smem>>
    %171 = vector.broadcast %168 : f32 to vector<8x128xf32>
    %172 = arith.mulf %0, %171 : vector<8x128xf32>
    %173 = vector.broadcast %169 : f32 to vector<8x128xf32>
    %174 = arith.addf %172, %173 : vector<8x128xf32>
    %175 = math.tanh %174 : vector<8x128xf32>
    %176 = vector.broadcast %170 : f32 to vector<8x128xf32>
    %177 = arith.mulf %175, %176 : vector<8x128xf32>
    %178 = arith.addf %167, %177 : vector<8x128xf32>
    %c16 = arith.constant 16 : index
    %179 = memref.load %arg2[%c16] : memref<32xf32, #tpu.memory_space<smem>>
    %c16_35 = arith.constant 16 : index
    %180 = memref.load %arg3[%c16_35] : memref<32xf32, #tpu.memory_space<smem>>
    %c16_36 = arith.constant 16 : index
    %181 = memref.load %arg4[%c16_36] : memref<32xf32, #tpu.memory_space<smem>>
    %182 = vector.broadcast %179 : f32 to vector<8x128xf32>
    %183 = arith.mulf %0, %182 : vector<8x128xf32>
    %184 = vector.broadcast %180 : f32 to vector<8x128xf32>
    %185 = arith.addf %183, %184 : vector<8x128xf32>
    %186 = math.tanh %185 : vector<8x128xf32>
    %187 = vector.broadcast %181 : f32 to vector<8x128xf32>
    %188 = arith.mulf %186, %187 : vector<8x128xf32>
    %189 = arith.addf %178, %188 : vector<8x128xf32>
    %c17 = arith.constant 17 : index
    %190 = memref.load %arg2[%c17] : memref<32xf32, #tpu.memory_space<smem>>
    %c17_37 = arith.constant 17 : index
    %191 = memref.load %arg3[%c17_37] : memref<32xf32, #tpu.memory_space<smem>>
    %c17_38 = arith.constant 17 : index
    %192 = memref.load %arg4[%c17_38] : memref<32xf32, #tpu.memory_space<smem>>
    %193 = vector.broadcast %190 : f32 to vector<8x128xf32>
    %194 = arith.mulf %0, %193 : vector<8x128xf32>
    %195 = vector.broadcast %191 : f32 to vector<8x128xf32>
    %196 = arith.addf %194, %195 : vector<8x128xf32>
    %197 = math.tanh %196 : vector<8x128xf32>
    %198 = vector.broadcast %192 : f32 to vector<8x128xf32>
    %199 = arith.mulf %197, %198 : vector<8x128xf32>
    %200 = arith.addf %189, %199 : vector<8x128xf32>
    %c18 = arith.constant 18 : index
    %201 = memref.load %arg2[%c18] : memref<32xf32, #tpu.memory_space<smem>>
    %c18_39 = arith.constant 18 : index
    %202 = memref.load %arg3[%c18_39] : memref<32xf32, #tpu.memory_space<smem>>
    %c18_40 = arith.constant 18 : index
    %203 = memref.load %arg4[%c18_40] : memref<32xf32, #tpu.memory_space<smem>>
    %204 = vector.broadcast %201 : f32 to vector<8x128xf32>
    %205 = arith.mulf %0, %204 : vector<8x128xf32>
    %206 = vector.broadcast %202 : f32 to vector<8x128xf32>
    %207 = arith.addf %205, %206 : vector<8x128xf32>
    %208 = math.tanh %207 : vector<8x128xf32>
    %209 = vector.broadcast %203 : f32 to vector<8x128xf32>
    %210 = arith.mulf %208, %209 : vector<8x128xf32>
    %211 = arith.addf %200, %210 : vector<8x128xf32>
    %c19 = arith.constant 19 : index
    %212 = memref.load %arg2[%c19] : memref<32xf32, #tpu.memory_space<smem>>
    %c19_41 = arith.constant 19 : index
    %213 = memref.load %arg3[%c19_41] : memref<32xf32, #tpu.memory_space<smem>>
    %c19_42 = arith.constant 19 : index
    %214 = memref.load %arg4[%c19_42] : memref<32xf32, #tpu.memory_space<smem>>
    %215 = vector.broadcast %212 : f32 to vector<8x128xf32>
    %216 = arith.mulf %0, %215 : vector<8x128xf32>
    %217 = vector.broadcast %213 : f32 to vector<8x128xf32>
    %218 = arith.addf %216, %217 : vector<8x128xf32>
    %219 = math.tanh %218 : vector<8x128xf32>
    %220 = vector.broadcast %214 : f32 to vector<8x128xf32>
    %221 = arith.mulf %219, %220 : vector<8x128xf32>
    %222 = arith.addf %211, %221 : vector<8x128xf32>
    %c20 = arith.constant 20 : index
    %223 = memref.load %arg2[%c20] : memref<32xf32, #tpu.memory_space<smem>>
    %c20_43 = arith.constant 20 : index
    %224 = memref.load %arg3[%c20_43] : memref<32xf32, #tpu.memory_space<smem>>
    %c20_44 = arith.constant 20 : index
    %225 = memref.load %arg4[%c20_44] : memref<32xf32, #tpu.memory_space<smem>>
    %226 = vector.broadcast %223 : f32 to vector<8x128xf32>
    %227 = arith.mulf %0, %226 : vector<8x128xf32>
    %228 = vector.broadcast %224 : f32 to vector<8x128xf32>
    %229 = arith.addf %227, %228 : vector<8x128xf32>
    %230 = math.tanh %229 : vector<8x128xf32>
    %231 = vector.broadcast %225 : f32 to vector<8x128xf32>
    %232 = arith.mulf %230, %231 : vector<8x128xf32>
    %233 = arith.addf %222, %232 : vector<8x128xf32>
    %c21 = arith.constant 21 : index
    %234 = memref.load %arg2[%c21] : memref<32xf32, #tpu.memory_space<smem>>
    %c21_45 = arith.constant 21 : index
    %235 = memref.load %arg3[%c21_45] : memref<32xf32, #tpu.memory_space<smem>>
    %c21_46 = arith.constant 21 : index
    %236 = memref.load %arg4[%c21_46] : memref<32xf32, #tpu.memory_space<smem>>
    %237 = vector.broadcast %234 : f32 to vector<8x128xf32>
    %238 = arith.mulf %0, %237 : vector<8x128xf32>
    %239 = vector.broadcast %235 : f32 to vector<8x128xf32>
    %240 = arith.addf %238, %239 : vector<8x128xf32>
    %241 = math.tanh %240 : vector<8x128xf32>
    %242 = vector.broadcast %236 : f32 to vector<8x128xf32>
    %243 = arith.mulf %241, %242 : vector<8x128xf32>
    %244 = arith.addf %233, %243 : vector<8x128xf32>
    %c22 = arith.constant 22 : index
    %245 = memref.load %arg2[%c22] : memref<32xf32, #tpu.memory_space<smem>>
    %c22_47 = arith.constant 22 : index
    %246 = memref.load %arg3[%c22_47] : memref<32xf32, #tpu.memory_space<smem>>
    %c22_48 = arith.constant 22 : index
    %247 = memref.load %arg4[%c22_48] : memref<32xf32, #tpu.memory_space<smem>>
    %248 = vector.broadcast %245 : f32 to vector<8x128xf32>
    %249 = arith.mulf %0, %248 : vector<8x128xf32>
    %250 = vector.broadcast %246 : f32 to vector<8x128xf32>
    %251 = arith.addf %249, %250 : vector<8x128xf32>
    %252 = math.tanh %251 : vector<8x128xf32>
    %253 = vector.broadcast %247 : f32 to vector<8x128xf32>
    %254 = arith.mulf %252, %253 : vector<8x128xf32>
    %255 = arith.addf %244, %254 : vector<8x128xf32>
    %c23 = arith.constant 23 : index
    %256 = memref.load %arg2[%c23] : memref<32xf32, #tpu.memory_space<smem>>
    %c23_49 = arith.constant 23 : index
    %257 = memref.load %arg3[%c23_49] : memref<32xf32, #tpu.memory_space<smem>>
    %c23_50 = arith.constant 23 : index
    %258 = memref.load %arg4[%c23_50] : memref<32xf32, #tpu.memory_space<smem>>
    %259 = vector.broadcast %256 : f32 to vector<8x128xf32>
    %260 = arith.mulf %0, %259 : vector<8x128xf32>
    %261 = vector.broadcast %257 : f32 to vector<8x128xf32>
    %262 = arith.addf %260, %261 : vector<8x128xf32>
    %263 = math.tanh %262 : vector<8x128xf32>
    %264 = vector.broadcast %258 : f32 to vector<8x128xf32>
    %265 = arith.mulf %263, %264 : vector<8x128xf32>
    %266 = arith.addf %255, %265 : vector<8x128xf32>
    %c24 = arith.constant 24 : index
    %267 = memref.load %arg2[%c24] : memref<32xf32, #tpu.memory_space<smem>>
    %c24_51 = arith.constant 24 : index
    %268 = memref.load %arg3[%c24_51] : memref<32xf32, #tpu.memory_space<smem>>
    %c24_52 = arith.constant 24 : index
    %269 = memref.load %arg4[%c24_52] : memref<32xf32, #tpu.memory_space<smem>>
    %270 = vector.broadcast %267 : f32 to vector<8x128xf32>
    %271 = arith.mulf %0, %270 : vector<8x128xf32>
    %272 = vector.broadcast %268 : f32 to vector<8x128xf32>
    %273 = arith.addf %271, %272 : vector<8x128xf32>
    %274 = math.tanh %273 : vector<8x128xf32>
    %275 = vector.broadcast %269 : f32 to vector<8x128xf32>
    %276 = arith.mulf %274, %275 : vector<8x128xf32>
    %277 = arith.addf %266, %276 : vector<8x128xf32>
    %c25 = arith.constant 25 : index
    %278 = memref.load %arg2[%c25] : memref<32xf32, #tpu.memory_space<smem>>
    %c25_53 = arith.constant 25 : index
    %279 = memref.load %arg3[%c25_53] : memref<32xf32, #tpu.memory_space<smem>>
    %c25_54 = arith.constant 25 : index
    %280 = memref.load %arg4[%c25_54] : memref<32xf32, #tpu.memory_space<smem>>
    %281 = vector.broadcast %278 : f32 to vector<8x128xf32>
    %282 = arith.mulf %0, %281 : vector<8x128xf32>
    %283 = vector.broadcast %279 : f32 to vector<8x128xf32>
    %284 = arith.addf %282, %283 : vector<8x128xf32>
    %285 = math.tanh %284 : vector<8x128xf32>
    %286 = vector.broadcast %280 : f32 to vector<8x128xf32>
    %287 = arith.mulf %285, %286 : vector<8x128xf32>
    %288 = arith.addf %277, %287 : vector<8x128xf32>
    %c26 = arith.constant 26 : index
    %289 = memref.load %arg2[%c26] : memref<32xf32, #tpu.memory_space<smem>>
    %c26_55 = arith.constant 26 : index
    %290 = memref.load %arg3[%c26_55] : memref<32xf32, #tpu.memory_space<smem>>
    %c26_56 = arith.constant 26 : index
    %291 = memref.load %arg4[%c26_56] : memref<32xf32, #tpu.memory_space<smem>>
    %292 = vector.broadcast %289 : f32 to vector<8x128xf32>
    %293 = arith.mulf %0, %292 : vector<8x128xf32>
    %294 = vector.broadcast %290 : f32 to vector<8x128xf32>
    %295 = arith.addf %293, %294 : vector<8x128xf32>
    %296 = math.tanh %295 : vector<8x128xf32>
    %297 = vector.broadcast %291 : f32 to vector<8x128xf32>
    %298 = arith.mulf %296, %297 : vector<8x128xf32>
    %299 = arith.addf %288, %298 : vector<8x128xf32>
    %c27 = arith.constant 27 : index
    %300 = memref.load %arg2[%c27] : memref<32xf32, #tpu.memory_space<smem>>
    %c27_57 = arith.constant 27 : index
    %301 = memref.load %arg3[%c27_57] : memref<32xf32, #tpu.memory_space<smem>>
    %c27_58 = arith.constant 27 : index
    %302 = memref.load %arg4[%c27_58] : memref<32xf32, #tpu.memory_space<smem>>
    %303 = vector.broadcast %300 : f32 to vector<8x128xf32>
    %304 = arith.mulf %0, %303 : vector<8x128xf32>
    %305 = vector.broadcast %301 : f32 to vector<8x128xf32>
    %306 = arith.addf %304, %305 : vector<8x128xf32>
    %307 = math.tanh %306 : vector<8x128xf32>
    %308 = vector.broadcast %302 : f32 to vector<8x128xf32>
    %309 = arith.mulf %307, %308 : vector<8x128xf32>
    %310 = arith.addf %299, %309 : vector<8x128xf32>
    %c28 = arith.constant 28 : index
    %311 = memref.load %arg2[%c28] : memref<32xf32, #tpu.memory_space<smem>>
    %c28_59 = arith.constant 28 : index
    %312 = memref.load %arg3[%c28_59] : memref<32xf32, #tpu.memory_space<smem>>
    %c28_60 = arith.constant 28 : index
    %313 = memref.load %arg4[%c28_60] : memref<32xf32, #tpu.memory_space<smem>>
    %314 = vector.broadcast %311 : f32 to vector<8x128xf32>
    %315 = arith.mulf %0, %314 : vector<8x128xf32>
    %316 = vector.broadcast %312 : f32 to vector<8x128xf32>
    %317 = arith.addf %315, %316 : vector<8x128xf32>
    %318 = math.tanh %317 : vector<8x128xf32>
    %319 = vector.broadcast %313 : f32 to vector<8x128xf32>
    %320 = arith.mulf %318, %319 : vector<8x128xf32>
    %321 = arith.addf %310, %320 : vector<8x128xf32>
    %c29 = arith.constant 29 : index
    %322 = memref.load %arg2[%c29] : memref<32xf32, #tpu.memory_space<smem>>
    %c29_61 = arith.constant 29 : index
    %323 = memref.load %arg3[%c29_61] : memref<32xf32, #tpu.memory_space<smem>>
    %c29_62 = arith.constant 29 : index
    %324 = memref.load %arg4[%c29_62] : memref<32xf32, #tpu.memory_space<smem>>
    %325 = vector.broadcast %322 : f32 to vector<8x128xf32>
    %326 = arith.mulf %0, %325 : vector<8x128xf32>
    %327 = vector.broadcast %323 : f32 to vector<8x128xf32>
    %328 = arith.addf %326, %327 : vector<8x128xf32>
    %329 = math.tanh %328 : vector<8x128xf32>
    %330 = vector.broadcast %324 : f32 to vector<8x128xf32>
    %331 = arith.mulf %329, %330 : vector<8x128xf32>
    %332 = arith.addf %321, %331 : vector<8x128xf32>
    %c30 = arith.constant 30 : index
    %333 = memref.load %arg2[%c30] : memref<32xf32, #tpu.memory_space<smem>>
    %c30_63 = arith.constant 30 : index
    %334 = memref.load %arg3[%c30_63] : memref<32xf32, #tpu.memory_space<smem>>
    %c30_64 = arith.constant 30 : index
    %335 = memref.load %arg4[%c30_64] : memref<32xf32, #tpu.memory_space<smem>>
    %336 = vector.broadcast %333 : f32 to vector<8x128xf32>
    %337 = arith.mulf %0, %336 : vector<8x128xf32>
    %338 = vector.broadcast %334 : f32 to vector<8x128xf32>
    %339 = arith.addf %337, %338 : vector<8x128xf32>
    %340 = math.tanh %339 : vector<8x128xf32>
    %341 = vector.broadcast %335 : f32 to vector<8x128xf32>
    %342 = arith.mulf %340, %341 : vector<8x128xf32>
    %343 = arith.addf %332, %342 : vector<8x128xf32>
    %c31 = arith.constant 31 : index
    %344 = memref.load %arg2[%c31] : memref<32xf32, #tpu.memory_space<smem>>
    %c31_65 = arith.constant 31 : index
    %345 = memref.load %arg3[%c31_65] : memref<32xf32, #tpu.memory_space<smem>>
    %c31_66 = arith.constant 31 : index
    %346 = memref.load %arg4[%c31_66] : memref<32xf32, #tpu.memory_space<smem>>
    %347 = vector.broadcast %344 : f32 to vector<8x128xf32>
    %348 = arith.mulf %0, %347 : vector<8x128xf32>
    %349 = vector.broadcast %345 : f32 to vector<8x128xf32>
    %350 = arith.addf %348, %349 : vector<8x128xf32>
    %351 = math.tanh %350 : vector<8x128xf32>
    %352 = vector.broadcast %346 : f32 to vector<8x128xf32>
    %353 = arith.mulf %351, %352 : vector<8x128xf32>
    %354 = arith.addf %343, %353 : vector<8x128xf32>
    %c0_67 = arith.constant 0 : index
    %c0_68 = arith.constant 0 : index
    %355 = vector.load %arg6[%c0_67, %c0_68] : memref<8x128xf32, #tpu.memory_space<vmem>>, vector<8x128xf32>
    tpu.vector_store %arg6[%c0_67, %c0_68], %354 {strides = array<i32>} : memref<8x128xf32, #tpu.memory_space<vmem>>, vector<8x128xf32>,
    return
  }
  func.func @transform_0(%arg0: i32) -> (i32, i32) {
    %c0_i32 = arith.constant 0 : i32
    %c0_i32_0 = arith.constant 0 : i32
    return %arg0, %c0_i32 : i32, i32
  }
  func.func @transform_1(%arg0: i32) -> i32 {
    %c0_i32 = arith.constant 0 : i32
    %c0_i32_0 = arith.constant 0 : i32
    return %c0_i32 : i32
  }
  func.func @transform_2(%arg0: i32) -> i32 {
    %c0_i32 = arith.constant 0 : i32
    %c0_i32_0 = arith.constant 0 : i32
    return %c0_i32 : i32
  }
  func.func @transform_3(%arg0: i32) -> i32 {
    %c0_i32 = arith.constant 0 : i32
    %c0_i32_0 = arith.constant 0 : i32
    return %c0_i32 : i32
  }
  func.func @transform_4(%arg0: i32) -> i32 {
    %c0_i32 = arith.constant 0 : i32
    %c0_i32_0 = arith.constant 0 : i32
    return %c0_i32 : i32
  }
  func.func @transform_5(%arg0: i32) -> (i32, i32) {
    %c0_i32 = arith.constant 0 : i32
    %c0_i32_0 = arith.constant 0 : i32
    return %arg0, %c0_i32 : i32, i32
  }
}

</mosaic_0001>

<llo_original>
// kernel: tpu_custom_call.1
$region0: #{tpu_custom_call.1}
  #allocation0 [shape = 'u32[]', space=smem, size = 0x4, offset = 0x4, fixed_abs, tag = 'smem constant byte address 0x4 - core index']
  #allocation1 [shape = 'u32[144,128]{1,0:T(1,128)}', space=vmem, size = 0x12000, scoped, tag = 'internal scratch']
  #allocation2 [shape = 'f32[1]{0:T(128)S(6)}', space=smem, size = 0x200, scoped, tag = 'scoped memory for tpu_custom_call.1']
  %s0 = inlined_call_operand.hbm [shape: f32[8,128], index: 0, kind: input, shape index: {}]
  %s1 = inlined_call_operand.vmem [shape: f32[32], index: 1, kind: input, shape index: {}]
  %s2 = inlined_call_operand.vmem [shape: f32[32], index: 2, kind: input, shape index: {}]
  %s3 = inlined_call_operand.vmem [shape: f32[32], index: 3, kind: input, shape index: {}]
  %s4 = inlined_call_operand.<no memory space> [shape: f32[1], index: 4, kind: input, shape index: {}]
  %s5 = inlined_call_operand.hbm [shape: f32[8,128], index: 5, kind: output, shape index: {}]
  %s6 = sld [smem:[#allocation0]]
  $region46: #{tpu_custom_call.1} parent=0
    _
  %s8 = ssub.s32 1, %s6
  %s9 = scalar_select 0, %s8, %s6
  %10 = sst [smem:[#allocation2]] %s4
  $region1: #{tpu_custom_call.1} parent=0
    #allocation3 [shape = 'u8[4096]{0}', space=vmem, size = 0x1000, scoped, tag = 'input window, operand 0, single buffered']
    #allocation4 [shape = 's32[1]{0}', space=sflag, size = 0x4, scoped, tag = 'scoped memory for tpu_custom_call.1']
    #allocation5 [shape = 's32[1]{0}', space=sflag, size = 0x4, scoped, tag = 'scoped memory for tpu_custom_call.1']
    #allocation6 [shape = 's32[1]{0}', space=sflag, size = 0x4, scoped, tag = 'scoped memory for tpu_custom_call.1']
    #allocation7 [shape = 'u8[512]{0}', space=smem, size = 0x200, scoped, tag = 'input window, operand 1, single buffered']
    #allocation8 [shape = 'u8[512]{0}', space=smem, size = 0x200, scoped, tag = 'input window, operand 2, single buffered']
    #allocation9 [shape = 's32[1]{0}', space=sflag, size = 0x4, scoped, tag = 'scoped memory for tpu_custom_call.1']
    #allocation10 [shape = 'u8[512]{0}', space=smem, size = 0x200, scoped, tag = 'input window, operand 3, single buffered']
    #allocation11 [shape = 'u8[4096]{0}', space=vmem, size = 0x1000, scoped, tag = 'output window, operand 0, single buffered']
    %11 = vsyncpa [#allocation4], 0
    %12 = vsyncpa [#allocation6], 0
    %13 = vsyncpa [#allocation9], 0
    %14 = vsyncpa [#allocation5], 0
    // Predicated region
    $region2: #{tpu_custom_call.1} parent=1 // pred_check
      _
    $region3: #{tpu_custom_call.1} parent=1 // pred_check_branch
      %16 = sbr.rel (0) target = $region5
    $region4: #{tpu_custom_call.1} parent=1 // pred_region
      %s18 = ssub.s32 128, 128
      %19 = vsyncadd [#allocation4], %s18
      %s21 = sshll.u32 [#allocation3], 4
      %s22 = int_to_ptr.vmem [resolvable:$true] %s21
      %24 = dma.hbm_to_vmem [thread:$0]  %s0, 128, %s22, [#allocation4]
    $region5: #{tpu_custom_call.1} parent=1 // pred_fallthru
      _
    // Predicated region
    $region6: #{tpu_custom_call.1} parent=1 // pred_check
      _
    $region7: #{tpu_custom_call.1} parent=1 // pred_check_branch
      %26 = sbr.rel (0) target = $region9
    $region8: #{tpu_custom_call.1} parent=1 // pred_region
      %s28 = ssub.s32 16, 16
      %29 = vsyncadd [#allocation6], %s28
      %s31 = sshll.u32 %s1, 4
      %s32 = int_to_ptr.vmem [resolvable:$true] %s31
      %34 = dma.vmem_to_smem %s32, 16, [#allocation7], [#allocation6]
    $region9: #{tpu_custom_call.1} parent=1 // pred_fallthru
      _
    // Predicated region
    $region10: #{tpu_custom_call.1} parent=1 // pred_check
      _
    $region11: #{tpu_custom_call.1} parent=1 // pred_check_branch
      %36 = sbr.rel (0) target = $region13
    $region12: #{tpu_custom_call.1} parent=1 // pred_region
      %s38 = ssub.s32 16, 16
      %39 = vsyncadd [#allocation9], %s38
      %s41 = sshll.u32 %s2, 4
      %s42 = int_to_ptr.vmem [resolvable:$true] %s41
      %44 = dma.vmem_to_smem %s42, 16, [#allocation8], [#allocation9]
    $region13: #{tpu_custom_call.1} parent=1 // pred_fallthru
      _
    // Predicated region
    $region14: #{tpu_custom_call.1} parent=1 // pred_check
      _
    $region15: #{tpu_custom_call.1} parent=1 // pred_check_branch
      %46 = sbr.rel (0) target = $region17
    $region16: #{tpu_custom_call.1} parent=1 // pred_region
      %s48 = ssub.s32 16, 16
      %49 = vsyncadd [#allocation9], %s48
      %s51 = sshll.u32 %s3, 4
      %s52 = int_to_ptr.vmem [resolvable:$true] %s51
      %54 = dma.vmem_to_smem %s52, 16, [#allocation10], [#allocation9]
    $region17: #{tpu_custom_call.1} parent=1 // pred_fallthru
      _
    // Predicated region
    $region18: #{tpu_custom_call.1} parent=1 // pred_check
      _
    $region19: #{tpu_custom_call.1} parent=1 // pred_check_branch
      %56 = sbr.rel (0) target = $region21
    $region20: #{tpu_custom_call.1} parent=1 // pred_region
      _
    $region21: #{tpu_custom_call.1} parent=1 // pred_fallthru
      _
    // Predicated region
    $region22: #{tpu_custom_call.1} parent=1 // pred_check
      _
    $region23: #{tpu_custom_call.1} parent=1 // pred_check_branch
      %58 = sbr.rel (0) target = $region25
    $region24: #{tpu_custom_call.1} parent=1 // pred_region
      %59 = dma.done [#allocation4], 128
    $region25: #{tpu_custom_call.1} parent=1 // pred_fallthru
      _
    // Predicated region
    $region26: #{tpu_custom_call.1} parent=1 // pred_check
      _
    $region27: #{tpu_custom_call.1} parent=1 // pred_check_branch
      %61 = sbr.rel (0) target = $region29
    $region28: #{tpu_custom_call.1} parent=1 // pred_region
      %62 = dma.done [#allocation6], 16
    $region29: #{tpu_custom_call.1} parent=1 // pred_fallthru
      _
    // Predicated region
    $region30: #{tpu_custom_call.1} parent=1 // pred_check
      _
    $region31: #{tpu_custom_call.1} parent=1 // pred_check_branch
      %64 = sbr.rel (0) target = $region33
    $region32: #{tpu_custom_call.1} parent=1 // pred_region
      %65 = dma.done [#allocation9], 16
    $region33: #{tpu_custom_call.1} parent=1 // pred_fallthru
      _
    // Predicated region
    $region34: #{tpu_custom_call.1} parent=1 // pred_check
      _
    $region35: #{tpu_custom_call.1} parent=1 // pred_check_branch
      %67 = sbr.rel (0) target = $region37
    $region36: #{tpu_custom_call.1} parent=1 // pred_region
      %68 = dma.done [#allocation9], 16
    $region37: #{tpu_custom_call.1} parent=1 // pred_fallthru
      _
    %69 = sfence
    %v70 = vld [vmem:[#allocation3] sm:$0xff]
    %s71 = sld [smem:[#allocation7]]
    %s72 = sld [smem:[#allocation8]]
    %s73 = sld [smem:[#allocation10]]
    %v74 = vstv %s71
    %v75 = vmul.f32 %v70, %v74
    %v76 = vstv %s72
    %v77 = vadd.f32 %v75, %v76
    %v78 = vtanh.pop %v77
    %v79 = vstv %s73
    %v80 = vmul.f32 %v78, %v79
    %s81 = sld [smem:[#allocation2]]
    %v82 = vstv %s81
    %v83 = vadd.f32 %v80, %v82
    %s84 = sld [smem:[#allocation7 + $0x1]]
    %s85 = sld [smem:[#allocation8 + $0x1]]
    %s86 = sld [smem:[#allocation10 + $0x1]]
    %v87 = vstv %s84
    %v88 = vmul.f32 %v70, %v87
    %v89 = vstv %s85
    %v90 = vadd.f32 %v88, %v89
    %v91 = vtanh.pop %v90
    %v92 = vstv %s86
    %v93 = vmul.f32 %v91, %v92
    %v94 = vadd.f32 %v83, %v93
    %s95 = sld [smem:[#allocation7 + $0x2]]
    %s96 = sld [smem:[#allocation8 + $0x2]]
    %s97 = sld [smem:[#allocation10 + $0x2]]
    %v98 = vstv %s95
    %v99 = vmul.f32 %v70, %v98
    %v100 = vstv %s96
    %v101 = vadd.f32 %v99, %v100
    %v102 = vtanh.pop %v101
    %v103 = vstv %s97
    %v104 = vmul.f32 %v102, %v103
    %v105 = vadd.f32 %v94, %v104
    %s106 = sld [smem:[#allocation7 + $0x3]]
    %s107 = sld [smem:[#allocation8 + $0x3]]
    %s108 = sld [smem:[#allocation10 + $0x3]]
    %v109 = vstv %s106
    %v110 = vmul.f32 %v70, %v109
    %v111 = vstv %s107
    %v112 = vadd.f32 %v110, %v111
    %v113 = vtanh.pop %v112
    %v114 = vstv %s108
    %v115 = vmul.f32 %v113, %v114
    %v116 = vadd.f32 %v105, %v115
    %s117 = sld [smem:[#allocation7 + $0x4]]
    %s118 = sld [smem:[#allocation8 + $0x4]]
    %s119 = sld [smem:[#allocation10 + $0x4]]
    %v120 = vstv %s117
    %v121 = vmul.f32 %v70, %v120
    %v122 = vstv %s118
    %v123 = vadd.f32 %v121, %v122
    %v124 = vtanh.pop %v123
    %v125 = vstv %s119
    %v126 = vmul.f32 %v124, %v125
    %v127 = vadd.f32 %v116, %v126
    %s128 = sld [smem:[#allocation7 + $0x5]]
    %s129 = sld [smem:[#allocation8 + $0x5]]
    %s130 = sld [smem:[#allocation10 + $0x5]]
    %v131 = vstv %s128
    %v132 = vmul.f32 %v70, %v131
    %v133 = vstv %s129
    %v134 = vadd.f32 %v132, %v133
    %v135 = vtanh.pop %v134
    %v136 = vstv %s130
    %v137 = vmul.f32 %v135, %v136
    %v138 = vadd.f32 %v127, %v137
    %s139 = sld [smem:[#allocation7 + $0x6]]
    %s140 = sld [smem:[#allocation8 + $0x6]]
    %s141 = sld [smem:[#allocation10 + $0x6]]
    %v142 = vstv %s139
    %v143 = vmul.f32 %v70, %v142
    %v144 = vstv %s140
    %v145 = vadd.f32 %v143, %v144
    %v146 = vtanh.pop %v145
    %v147 = vstv %s141
    %v148 = vmul.f32 %v146, %v147
    %v149 = vadd.f32 %v138, %v148
    %s150 = sld [smem:[#allocation7 + $0x7]]
    %s151 = sld [smem:[#allocation8 + $0x7]]
    %s152 = sld [smem:[#allocation10 + $0x7]]
    %v153 = vstv %s150
    %v154 = vmul.f32 %v70, %v153
    %v155 = vstv %s151
    %v156 = vadd.f32 %v154, %v155
    %v157 = vtanh.pop %v156
    %v158 = vstv %s152
    %v159 = vmul.f32 %v157, %v158
    %v160 = vadd.f32 %v149, %v159
    %s161 = sld [smem:[#allocation7 + $0x8]]
    %s162 = sld [smem:[#allocation8 + $0x8]]
    %s163 = sld [smem:[#allocation10 + $0x8]]
    %v164 = vstv %s161
    %v165 = vmul.f32 %v70, %v164
    %v166 = vstv %s162
    %v167 = vadd.f32 %v165, %v166
    %v168 = vtanh.pop %v167
    %v169 = vstv %s163
    %v170 = vmul.f32 %v168, %v169
    %v171 = vadd.f32 %v160, %v170
    %s172 = sld [smem:[#allocation7 + $0x9]]
    %s173 = sld [smem:[#allocation8 + $0x9]]
    %s174 = sld [smem:[#allocation10 + $0x9]]
    %v175 = vstv %s172
    %v176 = vmul.f32 %v70, %v175
    %v177 = vstv %s173
    %v178 = vadd.f32 %v176, %v177
    %v179 = vtanh.pop %v178
    %v180 = vstv %s174
    %v181 = vmul.f32 %v179, %v180
    %v182 = vadd.f32 %v171, %v181
    %s183 = sld [smem:[#allocation7 + $0xa]]
    %s184 = sld [smem:[#allocation8 + $0xa]]
    %s185 = sld [smem:[#allocation10 + $0xa]]
    %v186 = vstv %s183
    %v187 = vmul.f32 %v70, %v186
    %v188 = vstv %s184
    %v189 = vadd.f32 %v187, %v188
    %v190 = vtanh.pop %v189
    %v191 = vstv %s185
    %v192 = vmul.f32 %v190, %v191
    %v193 = vadd.f32 %v182, %v192
    %s194 = sld [smem:[#allocation7 + $0xb]]
    %s195 = sld [smem:[#allocation8 + $0xb]]
    %s196 = sld [smem:[#allocation10 + $0xb]]
    %v197 = vstv %s194
    %v198 = vmul.f32 %v70, %v197
    %v199 = vstv %s195
    %v200 = vadd.f32 %v198, %v199
    %v201 = vtanh.pop %v200
    %v202 = vstv %s196
    %v203 = vmul.f32 %v201, %v202
    %v204 = vadd.f32 %v193, %v203
    %s205 = sld [smem:[#allocation7 + $0xc]]
    %s206 = sld [smem:[#allocation8 + $0xc]]
    %s207 = sld [smem:[#allocation10 + $0xc]]
    %v208 = vstv %s205
    %v209 = vmul.f32 %v70, %v208
    %v210 = vstv %s206
    %v211 = vadd.f32 %v209, %v210
    %v212 = vtanh.pop %v211
    %v213 = vstv %s207
    %v214 = vmul.f32 %v212, %v213
    %v215 = vadd.f32 %v204, %v214
    %s216 = sld [smem:[#allocation7 + $0xd]]
    %s217 = sld [smem:[#allocation8 + $0xd]]
    %s218 = sld [smem:[#allocation10 + $0xd]]
    %v219 = vstv %s216
    %v220 = vmul.f32 %v70, %v219
    %v221 = vstv %s217
    %v222 = vadd.f32 %v220, %v221
    %v223 = vtanh.pop %v222
    %v224 = vstv %s218
    %v225 = vmul.f32 %v223, %v224
    %v226 = vadd.f32 %v215, %v225
    %s227 = sld [smem:[#allocation7 + $0xe]]
    %s228 = sld [smem:[#allocation8 + $0xe]]
    %s229 = sld [smem:[#allocation10 + $0xe]]
    %v230 = vstv %s227
    %v231 = vmul.f32 %v70, %v230
    %v232 = vstv %s228
    %v233 = vadd.f32 %v231, %v232
    %v234 = vtanh.pop %v233
    %v235 = vstv %s229
    %v236 = vmul.f32 %v234, %v235
    %v237 = vadd.f32 %v226, %v236
    %s238 = sld [smem:[#allocation7 + $0xf]]
    %s239 = sld [smem:[#allocation8 + $0xf]]
    %s240 = sld [smem:[#allocation10 + $0xf]]
    %v241 = vstv %s238
    %v242 = vmul.f32 %v70, %v241
    %v243 = vstv %s239
    %v244 = vadd.f32 %v242, %v243
    %v245 = vtanh.pop %v244
    %v246 = vstv %s240
    %v247 = vmul.f32 %v245, %v246
    %v248 = vadd.f32 %v237, %v247
    %s249 = sld [smem:[#allocation7 + $0x10]]
    %s250 = sld [smem:[#allocation8 + $0x10]]
    %s251 = sld [smem:[#allocation10 + $0x10]]
    %v252 = vstv %s249
    %v253 = vmul.f32 %v70, %v252
    %v254 = vstv %s250
    %v255 = vadd.f32 %v253, %v254
    %v256 = vtanh.pop %v255
    %v257 = vstv %s251
    %v258 = vmul.f32 %v256, %v257
    %v259 = vadd.f32 %v248, %v258
    %s260 = sld [smem:[#allocation7 + $0x11]]
    %s261 = sld [smem:[#allocation8 + $0x11]]
    %s262 = sld [smem:[#allocation10 + $0x11]]
    %v263 = vstv %s260
    %v264 = vmul.f32 %v70, %v263
    %v265 = vstv %s261
    %v266 = vadd.f32 %v264, %v265
    %v267 = vtanh.pop %v266
    %v268 = vstv %s262
    %v269 = vmul.f32 %v267, %v268
    %v270 = vadd.f32 %v259, %v269
    %s271 = sld [smem:[#allocation7 + $0x12]]
    %s272 = sld [smem:[#allocation8 + $0x12]]
    %s273 = sld [smem:[#allocation10 + $0x12]]
    %v274 = vstv %s271
    %v275 = vmul.f32 %v70, %v274
    %v276 = vstv %s272
    %v277 = vadd.f32 %v275, %v276
    %v278 = vtanh.pop %v277
    %v279 = vstv %s273
    %v280 = vmul.f32 %v278, %v279
    %v281 = vadd.f32 %v270, %v280
    %s282 = sld [smem:[#allocation7 + $0x13]]
    %s283 = sld [smem:[#allocation8 + $0x13]]
    %s284 = sld [smem:[#allocation10 + $0x13]]
    %v285 = vstv %s282
    %v286 = vmul.f32 %v70, %v285
    %v287 = vstv %s283
    %v288 = vadd.f32 %v286, %v287
    %v289 = vtanh.pop %v288
    %v290 = vstv %s284
    %v291 = vmul.f32 %v289, %v290
    %v292 = vadd.f32 %v281, %v291
    %s293 = sld [smem:[#allocation7 + $0x14]]
    %s294 = sld [smem:[#allocation8 + $0x14]]
    %s295 = sld [smem:[#allocation10 + $0x14]]
    %v296 = vstv %s293
    %v297 = vmul.f32 %v70, %v296
    %v298 = vstv %s294
    %v299 = vadd.f32 %v297, %v298
    %v300 = vtanh.pop %v299
    %v301 = vstv %s295
    %v302 = vmul.f32 %v300, %v301
    %v303 = vadd.f32 %v292, %v302
    %s304 = sld [smem:[#allocation7 + $0x15]]
    %s305 = sld [smem:[#allocation8 + $0x15]]
    %s306 = sld [smem:[#allocation10 + $0x15]]
    %v307 = vstv %s304
    %v308 = vmul.f32 %v70, %v307
    %v309 = vstv %s305
    %v310 = vadd.f32 %v308, %v309
    %v311 = vtanh.pop %v310
    %v312 = vstv %s306
    %v313 = vmul.f32 %v311, %v312
    %v314 = vadd.f32 %v303, %v313
    %s315 = sld [smem:[#allocation7 + $0x16]]
    %s316 = sld [smem:[#allocation8 + $0x16]]
    %s317 = sld [smem:[#allocation10 + $0x16]]
    %v318 = vstv %s315
    %v319 = vmul.f32 %v70, %v318
    %v320 = vstv %s316
    %v321 = vadd.f32 %v319, %v320
    %v322 = vtanh.pop %v321
    %v323 = vstv %s317
    %v324 = vmul.f32 %v322, %v323
    %v325 = vadd.f32 %v314, %v324
    %s326 = sld [smem:[#allocation7 + $0x17]]
    %s327 = sld [smem:[#allocation8 + $0x17]]
    %s328 = sld [smem:[#allocation10 + $0x17]]
    %v329 = vstv %s326
    %v330 = vmul.f32 %v70, %v329
    %v331 = vstv %s327
    %v332 = vadd.f32 %v330, %v331
    %v333 = vtanh.pop %v332
    %v334 = vstv %s328
    %v335 = vmul.f32 %v333, %v334
    %v336 = vadd.f32 %v325, %v335
    %s337 = sld [smem:[#allocation7 + $0x18]]
    %s338 = sld [smem:[#allocation8 + $0x18]]
    %s339 = sld [smem:[#allocation10 + $0x18]]
    %v340 = vstv %s337
    %v341 = vmul.f32 %v70, %v340
    %v342 = vstv %s338
    %v343 = vadd.f32 %v341, %v342
    %v344 = vtanh.pop %v343
    %v345 = vstv %s339
    %v346 = vmul.f32 %v344, %v345
    %v347 = vadd.f32 %v336, %v346
    %s348 = sld [smem:[#allocation7 + $0x19]]
    %s349 = sld [smem:[#allocation8 + $0x19]]
    %s350 = sld [smem:[#allocation10 + $0x19]]
    %v351 = vstv %s348
    %v352 = vmul.f32 %v70, %v351
    %v353 = vstv %s349
    %v354 = vadd.f32 %v352, %v353
    %v355 = vtanh.pop %v354
    %v356 = vstv %s350
    %v357 = vmul.f32 %v355, %v356
    %v358 = vadd.f32 %v347, %v357
    %s359 = sld [smem:[#allocation7 + $0x1a]]
    %s360 = sld [smem:[#allocation8 + $0x1a]]
    %s361 = sld [smem:[#allocation10 + $0x1a]]
    %v362 = vstv %s359
    %v363 = vmul.f32 %v70, %v362
    %v364 = vstv %s360
    %v365 = vadd.f32 %v363, %v364
    %v366 = vtanh.pop %v365
    %v367 = vstv %s361
    %v368 = vmul.f32 %v366, %v367
    %v369 = vadd.f32 %v358, %v368
    %s370 = sld [smem:[#allocation7 + $0x1b]]
    %s371 = sld [smem:[#allocation8 + $0x1b]]
    %s372 = sld [smem:[#allocation10 + $0x1b]]
    %v373 = vstv %s370
    %v374 = vmul.f32 %v70, %v373
    %v375 = vstv %s371
    %v376 = vadd.f32 %v374, %v375
    %v377 = vtanh.pop %v376
    %v378 = vstv %s372
    %v379 = vmul.f32 %v377, %v378
    %v380 = vadd.f32 %v369, %v379
    %s381 = sld [smem:[#allocation7 + $0x1c]]
    %s382 = sld [smem:[#allocation8 + $0x1c]]
    %s383 = sld [smem:[#allocation10 + $0x1c]]
    %v384 = vstv %s381
    %v385 = vmul.f32 %v70, %v384
    %v386 = vstv %s382
    %v387 = vadd.f32 %v385, %v386
    %v388 = vtanh.pop %v387
    %v389 = vstv %s383
    %v390 = vmul.f32 %v388, %v389
    %v391 = vadd.f32 %v380, %v390
    %s392 = sld [smem:[#allocation7 + $0x1d]]
    %s393 = sld [smem:[#allocation8 + $0x1d]]
    %s394 = sld [smem:[#allocation10 + $0x1d]]
    %v395 = vstv %s392
    %v396 = vmul.f32 %v70, %v395
    %v397 = vstv %s393
    %v398 = vadd.f32 %v396, %v397
    %v399 = vtanh.pop %v398
    %v400 = vstv %s394
    %v401 = vmul.f32 %v399, %v400
    %v402 = vadd.f32 %v391, %v401
    %s403 = sld [smem:[#allocation7 + $0x1e]]
    %s404 = sld [smem:[#allocation8 + $0x1e]]
    %s405 = sld [smem:[#allocation10 + $0x1e]]
    %v406 = vstv %s403
    %v407 = vmul.f32 %v70, %v406
    %v408 = vstv %s404
    %v409 = vadd.f32 %v407, %v408
    %v410 = vtanh.pop %v409
    %v411 = vstv %s405
    %v412 = vmul.f32 %v410, %v411
    %v413 = vadd.f32 %v402, %v412
    %s414 = sld [smem:[#allocation7 + $0x1f]]
    %s415 = sld [smem:[#allocation8 + $0x1f]]
    %s416 = sld [smem:[#allocation10 + $0x1f]]
    %v417 = vstv %s414
    %v418 = vmul.f32 %v70, %v417
    %v419 = vstv %s415
    %v420 = vadd.f32 %v418, %v419
    %v421 = vtanh.pop %v420
    %v422 = vstv %s416
    %v423 = vmul.f32 %v421, %v422
    %v424 = vadd.f32 %v413, %v423
    %425 = vst [vmem:[#allocation11] sm:$0xff] %v424
    // Predicated region
    $region38: #{tpu_custom_call.1} parent=1 // pred_check
      _
    $region39: #{tpu_custom_call.1} parent=1 // pred_check_branch
      %427 = sbr.rel (0) target = $region41
    $region40: #{tpu_custom_call.1} parent=1 // pred_region
      %s429 = ssub.s32 128, 128
      %430 = vsyncadd [#allocation5], %s429
      %s432 = sshll.u32 [#allocation11], 4
      %s433 = int_to_ptr.vmem [resolvable:$true] %s432
      %435 = dma.vmem_to_hbm [thread:$0]  %s433, 128, %s5, [#allocation5]
    $region41: #{tpu_custom_call.1} parent=1 // pred_fallthru
      _
    // Predicated region
    $region42: #{tpu_custom_call.1} parent=1 // pred_check
      _
    $region43: #{tpu_custom_call.1} parent=1 // pred_check_branch
      %437 = sbr.rel (0) target = $region45
    $region44: #{tpu_custom_call.1} parent=1 // pred_region
      %438 = dma.done [#allocation5], 128
    $region45: #{tpu_custom_call.1} parent=1 // pred_fallthru
      _
    %439 = vsyncpa [#allocation4], 1
    %440 = vsyncpa [#allocation5], 1
    %441 = vsyncpa [#allocation6], 1
    %442 = vsyncpa [#allocation9], 1

</llo_original>
